<compile_context>
chip_gen: v5e
topology: v5e:2x2
jax: 0.10.0
libtpu: 0.0.40
codegen_flags: <defaults>
</compile_context>

<pallas_src>
import math

import jax
import jax.numpy as jnp
from jax.experimental import pallas as pl
from jax.experimental.pallas import tpu as pltpu


# ------------------------------- tuning knobs ------------------------------- #

def _detect_vmem_budget():
    """Generation-aware (scoped VMEM limit, tiling budget) in bytes."""
    cap = None
    try:
        info = pltpu.get_tpu_info()
        for name in ("vmem_capacity_bytes", "vmem_size_bytes", "vmem_bytes"):
            cap = getattr(info, name, None)
            if cap:
                break
    except Exception:
        cap = None
    if cap is not None and cap >= (96 << 20):    # v5e / v6e class: 128 MiB physical
        limit = 64 << 20
    elif cap is not None:                        # v7x class: 64 MiB physical per TC
        limit = 40 << 20
    else:                                        # unknown backend: stay conservative
        limit = 32 << 20
    return limit, limit - (8 << 20)              # headroom under the scoped limit


_VMEM_LIMIT_BYTES, _VMEM_BUDGET_BYTES = _detect_vmem_budget()
_TARGET_BLOCK_BYTES = 16 << 20      # ~16 MiB output DMAs: ~0.35 us/step overhead <~3%
_TRANSPOSE_TILE = 1024              # per-axis tile cap (multiple of 128) for transpose


def _cdiv(a, b):
    return -(-a // b)


def _round_up(a, b):
    return _cdiv(a, b) * b


# ------------------------------ Pallas kernels ------------------------------ #

def _transpose_kernel(e_ref, o_ref):
    # (tn, te) -> (te, tn) on the XLU.  Padded edge regions transpose garbage into
    # the output block's own padded region, which Pallas discards on writeback.
    o_ref[...] = e_ref[...].T


def _broadcast_kernel(t_ref, o_ref):
    # t_ref: (1, ft) slice of the flattened table; o_ref: (bt, ft) lane-dense tile.
    o_ref[...] = jnp.broadcast_to(t_ref[...], o_ref.shape)


# ----------------------------- kernel wrappers ------------------------------ #

def _pallas_transpose(emb, tile_cap=_TRANSPOSE_TILE):
    """(n, e) -> (e, n) via the XLU, tiled with padded edge tiles for large tables."""
    assert tile_cap % 128 == 0
    n, e = emb.shape

    def pick(dim):
        # Full-extent block for small dims (always legal); otherwise a 128-multiple
        # tile (legal as both a sublane and a lane block dim) with a padded edge.
        return dim if dim <= tile_cap else tile_cap

    tn, te = pick(n), pick(e)
    return pl.pallas_call(
        _transpose_kernel,
        out_shape=jax.ShapeDtypeStruct((e, n), emb.dtype),
        grid=(_cdiv(n, tn), _cdiv(e, te)),
        in_specs=[pl.BlockSpec((tn, te), lambda i, j: (i, j))],
        out_specs=pl.BlockSpec((te, tn), lambda i, j: (j, i)),
        compiler_params=pltpu.CompilerParams(
            dimension_semantics=("parallel", "parallel"),
            vmem_limit_bytes=_VMEM_LIMIT_BYTES),
    )(emb)


def _pallas_broadcast_flat(emb, batch, *, force_bt=None, force_ft=None):
    """Broadcast the flattened embedding table to (batch, emb.size).

    Lane-dense layout: the table is treated as one (1, flat) row so output stores
    are full 128-lane writes even when emb_size < 128.  Tiled over batch (bt rows,
    8-aligned, partial last block allowed) and, for very large tables, over the
    flat axis (ft, a multiple of 128).
    """
    flat = int(emb.size)
    itemsize = emb.dtype.itemsize
    total_bytes = batch * flat * itemsize

    # ---- flat (lane) tile ------------------------------------------------- #
    # A (1, ft) table block pads to 8 sublanes in VMEM -> 8*ft*itemsize / buffer.
    if force_ft is not None:
        ft = int(force_ft)
    else:
        min_ws = (2 * 8 * flat + 2 * 8 * flat) * itemsize   # 8-row out x2 + table x2
        if min_ws <= _VMEM_BUDGET_BYTES or flat <= 128:
            ft = flat
        else:
            max_ft = _VMEM_BUDGET_BYTES // (32 * itemsize)
            ft = max(128, (max_ft // 128) * 128)
    f_blocks = _cdiv(flat, ft)
    table_invariant = (f_blocks == 1)
    table_bufs = 1 if table_invariant else 2
    table_bytes = table_bufs * 8 * ft * itemsize

    # ---- batch (sublane) tile --------------------------------------------- #
    if force_bt is not None:
        bt = int(force_bt)
    else:
        avail_out = max(_VMEM_BUDGET_BYTES - table_bytes, 2 * 8 * ft * itemsize)
        bt_vmem = max(8, avail_out // (2 * ft * itemsize))       # double-buffered out
        bt_tgt = max(8, _TARGET_BLOCK_BYTES // (ft * itemsize))
        bt = min(batch, bt_vmem, bt_tgt)
        # v7x megacore: keep >=2-4 parallel grid steps once the output is big
        # enough for the two-TensorCore split to matter (no effect on v5e/v6e).
        if table_invariant:
            if total_bytes >= (2 << 20) and batch >= 32:
                bt = min(bt, _round_up(_cdiv(batch, 4), 8))
            elif total_bytes >= (1 << 20) and batch >= 16:
                bt = min(bt, _round_up(_cdiv(batch, 2), 8))
        bt = batch if bt >= batch else max(8, (bt // 8) * 8)      # sublane-aligned
    b_blocks = _cdiv(batch, bt)

    compiler_params = pltpu.CompilerParams(
        dimension_semantics=("parallel", "parallel"),
        vmem_limit_bytes=_VMEM_LIMIT_BYTES)
    flat_table = emb.reshape(1, flat)
    out_shape = jax.ShapeDtypeStruct((batch, flat), emb.dtype)
    out_spec = pl.BlockSpec((bt, ft), lambda b, f: (b, f))

    def run(single_buffer_table):
        if single_buffer_table:
            in_spec = pl.BlockSpec((1, ft), lambda b, f: (0, f),
                                   pipeline_mode=pl.Buffered(1))
        else:
            in_spec = pl.BlockSpec((1, ft), lambda b, f: (0, f))
        return pl.pallas_call(
            _broadcast_kernel,
            out_shape=out_shape,
            grid=(b_blocks, f_blocks),
            in_specs=[in_spec],
            out_specs=out_spec,
            compiler_params=compiler_params,
        )(flat_table)

    if table_invariant:
        try:
            # Grid-invariant table block: a single pipeline buffer is enough.
            out = run(True)
        except Exception:
            # Buffered(1) support can vary across jax builds; double-buffered
            # path is always valid and costs only 8*ft*itemsize extra VMEM.
            out = run(False)
    else:
        out = run(False)
    return out


# ------------------------------ Module wrapper ------------------------------ #

class StaticGraphEmbedding:
    """JAX/Pallas port of tsl.nn.base.embedding.StaticGraphEmbedding (forward)."""

    def __init__(self, n_tokens, emb_size, key, initializer="uniform"):
        assert emb_size > 0 and n_tokens > 0
        self.n_tokens = int(n_tokens)
        self.emb_size = int(emb_size)
        if initializer == "uniform" or initializer is None:
            # torch_geometric inits.uniform(size, tensor): bound = 1/sqrt(size)
            bound = 1.0 / math.sqrt(self.emb_size)
            self.emb = jax.random.uniform(
                key, (self.n_tokens, self.emb_size),
                dtype=jnp.float32, minval=-bound, maxval=bound)
        else:
            # TODO(synk): lazy init (bind_to forward-pre-hook) and the
            # 'glorot'/'kaiming_*'/'from_values' initializers are not reproduced.
            raise RuntimeError(
                f"Embedding initializer '{initializer}' is not supported")

    def __call__(self, expand=None, nodes_first=True):
        if expand is None:
            # No broadcast requested: return the table (or its one-off transpose).
            return self.emb if nodes_first else _pallas_transpose(self.emb)

        expand = list(expand)
        if any(d == 0 or d < -1 for d in expand):
            raise ValueError(f"Unsupported expand sizes {expand}")
        if sum(1 for d in expand if d <= 0) != 2:
            raise ValueError(f"expand={expand} must contain exactly two -1 entries")

        # Reproduce PyTorch exactly: view = 1 where expand dim > 0, otherwise pop
        # the next table dim (front if nodes_first else back), then
        # emb.view(*view).expand(*expand).  NOTE: torch .view is a RESHAPE of the
        # contiguous (n_tokens, emb_size) storage, never a transpose.
        shape = [self.n_tokens, self.emb_size]
        view = [1 if d > 0 else shape.pop(0 if nodes_first else -1) for d in expand]
        target = tuple(v if d <= 0 else d for d, v in zip(expand, view))

        # Fast path: both table dims are the trailing output dims (standard usage,
        # e.g. expand=[B, S, -1, -1]).  The broadcast operates on the flattened
        # table, so nodes_first only changes the final (metadata-only) reshape.
        if view[-2] != 1 and view[-1] != 1:
            lead = target[:-2]
            batch = int(math.prod(lead)) if lead else 1
            if batch == 1:
                # Pure metadata: no data movement needed.
                return self.emb.reshape(target)
            out = _pallas_broadcast_flat(self.emb, batch)
            return out.reshape(target)

        # TODO(synk): non-standard expand patterns (table dims not trailing) fall
        # back to a plain XLA broadcast instead of a Pallas kernel.
        return jnp.broadcast_to(jnp.reshape(self.emb, view), target)


# ---------------------------------- main ----------------------------------- #

if __name__ == "__main__":
    key = jax.random.PRNGKey(0)
    n_tokens, emb_size = 16, 32
    module = StaticGraphEmbedding(n_tokens, emb_size, key)
    emb = module.emb

    # 1) expand=None, nodes_first=True  -> the table itself (no kernel needed).
    out_plain = jax.block_until_ready(module())
    assert out_plain.shape == (n_tokens, emb_size)
    assert jnp.array_equal(out_plain, emb)

    # 2) expand=None, nodes_first=False -> Pallas transpose kernel.
    out_t = jax.block_until_ready(module(nodes_first=False))
    assert out_t.shape == (emb_size, n_tokens)
    assert jnp.allclose(out_t, emb.T)

    # 3) expand=[B, S, -1, -1], nodes_first=True -> lane-dense broadcast.
    B, S = 2, 8
    out_exp = jax.block_until_ready(module(expand=[B, S, -1, -1]))
    assert out_exp.shape == (B, S, n_tokens, emb_size)
    assert jnp.allclose(
        out_exp, jnp.broadcast_to(emb[None, None], (B, S, n_tokens, emb_size)))

    # 4) expand=[B, S, -1, -1], nodes_first=False.  Matches torch exactly:
    #    emb.view(1, 1, E, N).expand(B, S, E, N) == reshape, NOT transpose.
    out_exp_t = jax.block_until_ready(module(expand=[B, S, -1, -1], nodes_first=False))
    ref_t = jnp.broadcast_to(emb.reshape(1, 1, emb_size, n_tokens),
                             (B, S, emb_size, n_tokens))
    assert out_exp_t.shape == (B, S, emb_size, n_tokens)
    assert jnp.allclose(out_exp_t, ref_t)

    # 5) small, non-sublane-multiple leading broadcast (single full block).
    out_small = jax.block_until_ready(module(expand=[3, -1, -1]))
    assert jnp.allclose(
        out_small, jnp.broadcast_to(emb[None], (3, n_tokens, emb_size)))

    # 6) batch == 1 short-circuit (metadata-only reshape, no kernel).
    out_one = jax.block_until_ready(module(expand=[1, -1, -1]))
    assert out_one.shape == (1, n_tokens, emb_size)
    assert jnp.array_equal(out_one, emb[None])

    # 7) non-trailing expand pattern -> plain XLA fallback path.
    out_mid = jax.block_until_ready(module(expand=[-1, 4, -1]))
    assert out_mid.shape == (n_tokens, 4, emb_size)
    assert jnp.allclose(
        out_mid, jnp.broadcast_to(emb[:, None, :], (n_tokens, 4, emb_size)))

    # 8) partial last batch block (batch % bt != 0) with a forced small tile.
    emb_b = jax.random.normal(jax.random.PRNGKey(1), (8, 16), jnp.float32)
    out_pb = jax.block_until_ready(_pallas_broadcast_flat(emb_b, 20, force_bt=8))
    assert jnp.allclose(out_pb, jnp.broadcast_to(emb_b.reshape(1, -1), (20, 128)))

    # 9) flat-axis tiling (large-table path) + partial batch block.
    emb_c = jax.random.normal(jax.random.PRNGKey(2), (8, 32), jnp.float32)
    out_ft = jax.block_until_ready(
        _pallas_broadcast_flat(emb_c, 12, force_bt=8, force_ft=128))
    assert jnp.allclose(out_ft, jnp.broadcast_to(emb_c.reshape(1, -1), (12, 256)))

    # 10) padded-edge transpose tiles (n not a multiple of the row tile).
    module_big = StaticGraphEmbedding(200, 32, jax.random.PRNGKey(3))
    out_tt = jax.block_until_ready(_pallas_transpose(module_big.emb, tile_cap=128))
    assert jnp.allclose(out_tt, module_big.emb.T)

    print("KERNEL_OK")
</pallas_src>

<mosaic_0001>
module attributes {stable_mosaic.version = 11 : i64} {
  func.func @_transpose_kernel(%arg0: i32, %arg1: i32, %arg2: memref<16x32xf32, #tpu.memory_space<vmem>>, %arg3: memref<32x16xf32, #tpu.memory_space<vmem>>) attributes {dimension_semantics = [#tpu.dimension_semantics<parallel>, #tpu.dimension_semantics<parallel>], iteration_bounds = array<i64: 1, 1>, scalar_prefetch = 0 : i64, scratch_operands = 0 : i64, tpu.core_type = #tpu.core_type<tc>, window_params = [{transform_indices = @transform_0, window_bounds = array<i64: 16, 32>}, {transform_indices = @transform_1, window_bounds = array<i64: 32, 16>}]} {
    %c0 = arith.constant 0 : index
    %c0_0 = arith.constant 0 : index
    %0 = vector.load %arg2[%c0, %c0_0] : memref<16x32xf32, #tpu.memory_space<vmem>>, vector<16x32xf32>
    %1 = tpu.transpose %0, [1, 0] : vector<16x32xf32> -> vector<32x16xf32>
    %c0_1 = arith.constant 0 : index
    %c0_2 = arith.constant 0 : index
    %2 = vector.load %arg3[%c0_1, %c0_2] : memref<32x16xf32, #tpu.memory_space<vmem>>, vector<32x16xf32>
    tpu.vector_store %arg3[%c0_1, %c0_2], %1 {strides = array<i32>} : memref<32x16xf32, #tpu.memory_space<vmem>>, vector<32x16xf32>,
    return
  }
  func.func @transform_0(%arg0: i32, %arg1: i32) -> (i32, i32) {
    %c0_i32 = arith.constant 0 : i32
    return %arg0, %arg1 : i32, i32
  }
  func.func @transform_1(%arg0: i32, %arg1: i32) -> (i32, i32) {
    %c0_i32 = arith.constant 0 : i32
    return %arg1, %arg0 : i32, i32
  }
}

</mosaic_0001>

<llo_original>
// kernel: tpu_custom_call.1
$region0: #{tpu_custom_call.1}
  #allocation0 [shape = 'u32[]', space=smem, size = 0x4, offset = 0x4, fixed_abs, tag = 'smem constant byte address 0x4 - core index']
  #allocation1 [shape = 'u32[72,128]{1,0:T(1,128)}', space=vmem, size = 0x9000, scoped, tag = 'internal scratch']
  %s0 = inlined_call_operand.hbm [shape: f32[16,32], index: 0, kind: input, shape index: {}]
  %s1 = inlined_call_operand.vmem [shape: f32[32,16], index: 1, kind: output, shape index: {}]
  %s2 = sld [smem:[#allocation0]]
  $region18: #{tpu_custom_call.1} parent=0
    _
  %s4 = ssub.s32 1, %s2
  %s5 = scalar_select 0, %s4, %s2
  $region1: #{tpu_custom_call.1} parent=0
    #allocation2 [shape = 'u8[8192]{0}', space=vmem, size = 0x2000, scoped, tag = 'input window, operand 0, single buffered']
    #allocation3 [shape = 's32[1]{0}', space=sflag, size = 0x4, scoped, tag = 'scoped memory for tpu_custom_call.1']
    %6 = vsyncpa [#allocation3], 0
    // Predicated region
    $region2: #{tpu_custom_call.1} parent=1 // pred_check
      _
    $region3: #{tpu_custom_call.1} parent=1 // pred_check_branch
      %8 = sbr.rel (0) target = $region5
    $region4: #{tpu_custom_call.1} parent=1 // pred_region
      %10 = vsyncadd [#allocation3], 0
      %s11 = sshll.u32 %s0, 4
      %s12 = int_to_ptr.hbm [resolvable:$true] %s11
      %s13 = sshll.u32 [#allocation2], 4
      %s14 = int_to_ptr.vmem [resolvable:$true] %s13
      %19 = dma.hbm_to_vmem [thread:$0]  %s12, 256, %s14, [#allocation3], 128, 128, 8
    $region5: #{tpu_custom_call.1} parent=1 // pred_fallthru
      _
    // Predicated region
    $region6: #{tpu_custom_call.1} parent=1 // pred_check
      _
    $region7: #{tpu_custom_call.1} parent=1 // pred_check_branch
      %21 = sbr.rel (0) target = $region9
    $region8: #{tpu_custom_call.1} parent=1 // pred_region
      %23 = dma.done [#allocation3], 256
    $region9: #{tpu_custom_call.1} parent=1 // pred_fallthru
      _
    %v24 = vld [vmem:[#allocation2] sm:$0xff]
    %v25 = vld [vmem:[#allocation2 + $0x8] sm:$0xff]
    %26 = vxpose.xlu0.b32.start [1/16] %v24, 128
    %27 = vxpose.xlu0.b32.cont [2/16] %v25, 128
    %28 = vxpose.xlu0.b32.cont [3/16] 0.0, 128
    %29 = vxpose.xlu0.b32.cont [4/16] 0.0, 128
    %30 = vxpose.xlu0.b32.cont [5/16] 0.0, 128
    %31 = vxpose.xlu0.b32.cont [6/16] 0.0, 128
    %32 = vxpose.xlu0.b32.cont [7/16] 0.0, 128
    %33 = vxpose.xlu0.b32.cont [8/16] 0.0, 128
    %34 = vxpose.xlu0.b32.cont [9/16] 0.0, 128
    %35 = vxpose.xlu0.b32.cont [10/16] 0.0, 128
    %36 = vxpose.xlu0.b32.cont [11/16] 0.0, 128
    %37 = vxpose.xlu0.b32.cont [12/16] 0.0, 128
    %38 = vxpose.xlu0.b32.cont [13/16] 0.0, 128
    %39 = vxpose.xlu0.b32.cont [14/16] 0.0, 128
    %40 = vxpose.xlu0.b32.cont [15/16] 0.0, 128
    %41 = vxpose.xlu0.b32.end [16/16] 0.0, 128
    %v42 = vpop.trf.xlu0
    %v43 = vpop.trf.xlu0
    %v44 = vpop.trf.xlu0
    %v45 = vpop.trf.xlu0
    %v46 = vpop.trf.xlu0
    %v47 = vpop.trf.xlu0
    %v48 = vpop.trf.xlu0
    %v49 = vpop.trf.xlu0
    %v50 = vpop.trf.xlu0
    %v51 = vpop.trf.xlu0
    %v52 = vpop.trf.xlu0
    %v53 = vpop.trf.xlu0
    %v54 = vpop.trf.xlu0
    %v55 = vpop.trf.xlu0
    %v56 = vpop.trf.xlu0
    %v57 = vpop.trf.xlu0
    %vm58 = vcmask 130048
    %59 = vst.msk [vmem:[%s1] sm:$0xff] %vm58, %v42
    %60 = vst.msk [vmem:[%s1 + $0x8] sm:$0xff] %vm58, %v43
    %61 = vst.msk [vmem:[%s1 + $0x10] sm:$0xff] %vm58, %v44
    %62 = vst.msk [vmem:[%s1 + $0x18] sm:$0xff] %vm58, %v45
    // Predicated region
    $region10: #{tpu_custom_call.1} parent=1 // pred_check
      _
    $region11: #{tpu_custom_call.1} parent=1 // pred_check_branch
      %64 = sbr.rel (0) target = $region13
    $region12: #{tpu_custom_call.1} parent=1 // pred_region
      _
    $region13: #{tpu_custom_call.1} parent=1 // pred_fallthru
      _
    // Predicated region
    $region14: #{tpu_custom_call.1} parent=1 // pred_check
      _
    $region15: #{tpu_custom_call.1} parent=1 // pred_check_branch
      %66 = sbr.rel (0) target = $region17
    $region16: #{tpu_custom_call.1} parent=1 // pred_region
      _
    $region17: #{tpu_custom_call.1} parent=1 // pred_fallthru
      _
    %67 = vsyncpa [#allocation3], 1

</llo_original>
